<compile_context>
chip_gen: v6e
topology: v6e:2x2x1
jax: 0.10.0
libtpu: 0.0.40
codegen_flags: <defaults>
</compile_context>

<pallas_src>
import functools

import jax
import jax.numpy as jnp
from jax.experimental import pallas as pl
from jax.experimental.pallas import tpu as pltpu


def _upsample_kernel(x_ref, wdt_ref, bdt_ref, wct_ref, bct_ref, o_ref, *, cin):
    # x_ref  : (Cin, TN)      f32   input pixels (channels on sublanes, pixels on lanes)
    # wdt_ref: (4*Cin, Cin)   bf16  deconv weights, rows ordered (kh, kw, co)
    # bdt_ref: (4*Cin, 1)     f32   deconv bias tiled 4x (column -> lane broadcast)
    # wct_ref: (Cout, Cin)    bf16  1x1 conv weight
    # bct_ref: (4*Cout, 1)    f32   1x1 conv bias tiled 4x
    # o_ref  : (4*Cout, TN)   f32   output, rows ordered (kh, kw, oc); TN lanes dense
    a = jnp.maximum(x_ref[...], 0.0)                     # relu in f32 (v5e: no bf16 VPU)
    a16 = a.astype(jnp.bfloat16)                         # bf16 feed for the MXU

    # Deconv: one wide matmul over all 4 kernel positions. (4Cin,Cin)@(Cin,TN)
    y = jnp.dot(wdt_ref[...], a16, preferred_element_type=jnp.float32)
    y = y + bdt_ref[...]
    z = jnp.maximum(y, 0.0).astype(jnp.bfloat16)         # (4*Cin, TN)

    # 1x1 conv: 4 matmuls sharing the same RHS-resident Wc (no kron, no wasted FLOPs).
    wct = wct_ref[...]
    outs = []
    for k in range(4):
        zk = z[k * cin:(k + 1) * cin, :]                 # (Cin, TN)
        outs.append(jnp.dot(wct, zk, preferred_element_type=jnp.float32))
    o = jnp.concatenate(outs, axis=0) + bct_ref[...]     # (4*Cout, TN)
    o_ref[...] = o.astype(o_ref.dtype)


def upsample_block_pallas(x_nchw, wd, bd, wc, bc, *, tile_n=512):
    """x_nchw: (B, Cin, H, W) float32.
    wd: (Cin, Cin, 2, 2)  ConvTranspose2d weight (in, out, kh, kw)
    bd: (Cin,)            ConvTranspose2d bias
    wc: (Cout, Cin, 1, 1) Conv2d 1x1 weight
    bc: (Cout,)           Conv2d bias
    tile_n: pixels per grid step (lane dim), multiple of 128.
            Sweep up to 1024-2048 on v6e (128 MiB VMEM); keep smaller on v7x
            (64 MiB) and v5e (16 MiB default scoped limit).
    Returns (B, Cout, 2H, 2W) float32.
    """
    B, Cin, H, W = x_nchw.shape
    Cout = wc.shape[0]
    assert tile_n % 128 == 0, "tile_n must be a multiple of 128 (lane-dense blocks)"

    HW = H * W
    n_blocks = pl.cdiv(HW, tile_n)
    hw_pad = n_blocks * tile_n

    # NCHW consumed directly: (B, Cin, H*W) is a free reshape of the NCHW buffer.
    x3 = x_nchw.reshape(B, Cin, HW)
    if hw_pad != HW:
        # Only pay a pad pass on ragged shapes; padded pixels are sliced off below.
        x3 = jnp.pad(x3, ((0, 0), (0, 0), (0, hw_pad - HW)))

    # Weight plumbing (plain JAX glue, tiny arrays).
    # wdt[(kh*2+kw)*Cin + co, ci] = wd[ci, co, kh, kw]
    wdt = jnp.transpose(wd, (2, 3, 1, 0)).reshape(4 * Cin, Cin).astype(jnp.bfloat16)
    bdt = jnp.tile(bd, 4).reshape(4 * Cin, 1).astype(jnp.float32)
    wct = wc[:, :, 0, 0].astype(jnp.bfloat16)                       # (Cout, Cin)
    bct = jnp.tile(bc, 4).reshape(4 * Cout, 1).astype(jnp.float32)

    # Explicit scoped-VMEM sizing: double-buffered in/out blocks + resident
    # weights + the materialized a/y/z/o intermediates, with 2x safety margin.
    blk_in = Cin * tile_n * 4                       # f32 input block
    blk_out = 4 * Cout * tile_n * 4                 # f32 output block
    w_bytes = (4 * Cin * Cin + Cout * Cin) * 2 + (4 * Cin + 4 * Cout) * 4
    interm = Cin * tile_n * 2 + 4 * Cin * tile_n * (4 + 2) + 4 * Cout * tile_n * 4
    vmem_limit = 2 * (2 * (blk_in + blk_out) + 2 * w_bytes + interm)
    vmem_limit = int(min(max(vmem_limit, 16 * (1 << 20)), 64 * (1 << 20)))

    kernel = functools.partial(_upsample_kernel, cin=Cin)

    out3 = pl.pallas_call(
        kernel,
        out_shape=jax.ShapeDtypeStruct((B, 4 * Cout, hw_pad), jnp.float32),
        grid_spec=pltpu.PrefetchScalarGridSpec(
            num_scalar_prefetch=0,
            grid=(B, n_blocks),
            in_specs=[
                pl.BlockSpec((None, Cin, tile_n), lambda b, j: (b, 0, j)),
                pl.BlockSpec((4 * Cin, Cin), lambda b, j: (0, 0)),
                pl.BlockSpec((4 * Cin, 1), lambda b, j: (0, 0)),
                pl.BlockSpec((Cout, Cin), lambda b, j: (0, 0)),
                pl.BlockSpec((4 * Cout, 1), lambda b, j: (0, 0)),
            ],
            out_specs=pl.BlockSpec((None, 4 * Cout, tile_n), lambda b, j: (b, 0, j)),
        ),
        compiler_params=pltpu.CompilerParams(
            dimension_semantics=("parallel", "parallel"),
            vmem_limit_bytes=vmem_limit),
    )(x3, wdt, bdt, wct, bct)

    if hw_pad != HW:
        out3 = out3[:, :, :HW]                                     # drop padded pixels

    # Un-scatter kernel positions: channel index = (kh*2+kw)*Cout + oc, pixel = h*W + w.
    o = out3.reshape(B, 2, 2, Cout, H, W)                          # (b, kh, kw, oc, h, w)
    o = jnp.transpose(o, (0, 3, 4, 1, 5, 2))                       # (b, oc, h, kh, w, kw)
    return o.reshape(B, Cout, 2 * H, 2 * W)


def _reference(x_nchw, wd, bd, wc, bc):
    """Pure-JAX reference mirroring the PyTorch forward exactly (NCHW, f32).

    PyTorch ConvTranspose2d(k=2, s=2):
        y[b, co, 2h+kh, 2w+kw] = sum_ci a[b, ci, h, w] * wd[ci, co, kh, kw] + bd[co]
    (direct scatter, no kernel flip).
    """
    B, Cin, H, W = x_nchw.shape
    a = jnp.maximum(x_nchw, 0.0)
    y = jnp.einsum('bchw,cdkl->bdhkwl', a, wd,
                   precision=jax.lax.Precision.HIGHEST)
    y = y.reshape(B, Cin, 2 * H, 2 * W) + bd.reshape(1, -1, 1, 1)
    z = jnp.maximum(y, 0.0)
    o = jnp.einsum('bchw,oc->bohw', z, wc[:, :, 0, 0],
                   precision=jax.lax.Precision.HIGHEST)
    return o + bc.reshape(1, -1, 1, 1)


if __name__ == "__main__":
    key = jax.random.PRNGKey(0)
    B, Cin, H, W = 2, 4, 16, 16
    Cout = 8

    k1, k2, k3, k4, k5 = jax.random.split(key, 5)
    x = jax.random.normal(k1, (B, Cin, H, W), dtype=jnp.float32)
    wd = jax.random.normal(k2, (Cin, Cin, 2, 2), dtype=jnp.float32) * 0.2
    bd = jax.random.normal(k3, (Cin,), dtype=jnp.float32) * 0.1
    wc = jax.random.normal(k4, (Cout, Cin, 1, 1), dtype=jnp.float32) * 0.2
    bc = jax.random.normal(k5, (Cout,), dtype=jnp.float32) * 0.1

    # tile_n=128 so the tiny demo (H*W = 256 pixels, B = 2) runs a 4-step grid
    # (>= 2 steps per v7x TensorCore, pipeline overlap active).  Production
    # sizes should sweep tile_n in 512..2048 per-generation (see docstring).
    out = jax.jit(functools.partial(upsample_block_pallas, tile_n=128))(
        x, wd, bd, wc, bc)
    out = jax.block_until_ready(out)

    ref = _reference(x, wd, bd, wc, bc)
    assert out.shape == (B, Cout, 2 * H, 2 * W), out.shape
    # bf16 MXU inputs vs. f32 HIGHEST-precision reference: ~0.5-1% relative error.
    assert jnp.allclose(out, ref, atol=5e-2, rtol=5e-2), float(
        jnp.max(jnp.abs(out - ref)))

    print("KERNEL_OK")
</pallas_src>

<mosaic_0001>
module attributes {stable_mosaic.version = 11 : i64} {
  func.func @_upsample_kernel(%arg0: i32, %arg1: i32, %arg2: memref<1x4x128xf32, #tpu.memory_space<vmem>>, %arg3: memref<16x4xbf16, #tpu.memory_space<vmem>>, %arg4: memref<16x1xf32, #tpu.memory_space<vmem>>, %arg5: memref<8x4xbf16, #tpu.memory_space<vmem>>, %arg6: memref<32x1xf32, #tpu.memory_space<vmem>>, %arg7: memref<1x32x128xf32, #tpu.memory_space<vmem>>) attributes {dimension_semantics = [#tpu.dimension_semantics<parallel>, #tpu.dimension_semantics<parallel>], iteration_bounds = array<i64: 2, 2>, scalar_prefetch = 0 : i64, scratch_operands = 0 : i64, tpu.core_type = #tpu.core_type<tc>, window_params = [{transform_indices = @transform_0, window_bounds = array<i64: 1, 4, 128>}, {pipeline_mode = #tpu.pipeline_mode<synchronous>, transform_indices = @transform_1, window_bounds = array<i64: 16, 4>}, {pipeline_mode = #tpu.pipeline_mode<synchronous>, transform_indices = @transform_2, window_bounds = array<i64: 16, 1>}, {pipeline_mode = #tpu.pipeline_mode<synchronous>, transform_indices = @transform_3, window_bounds = array<i64: 8, 4>}, {pipeline_mode = #tpu.pipeline_mode<synchronous>, transform_indices = @transform_4, window_bounds = array<i64: 32, 1>}, {transform_indices = @transform_5, window_bounds = array<i64: 1, 32, 128>}]} {
    %c0 = arith.constant 0 : index
    %c0_0 = arith.constant 0 : index
    %c0_1 = arith.constant 0 : index
    %0 = vector.load %arg2[%c0, %c0_0, %c0_1] : memref<1x4x128xf32, #tpu.memory_space<vmem>>, vector<1x4x128xf32>
    %1 = vector.shape_cast %0 : vector<1x4x128xf32> to vector<4x128xf32>
    %cst = arith.constant 0.000000e+00 : f32
    %2 = vector.broadcast %cst : f32 to vector<4x128xf32>
    %3 = arith.maximumf %1, %2 : vector<4x128xf32>
    %4 = arith.truncf %3 : vector<4x128xf32> to vector<4x128xbf16>
    %c0_2 = arith.constant 0 : index
    %c0_3 = arith.constant 0 : index
    %5 = vector.load %arg3[%c0_2, %c0_3] : memref<16x4xbf16, #tpu.memory_space<vmem>>, vector<16x4xbf16>
    %cst_4 = arith.constant dense<0.000000e+00> : vector<16x128xf32>
    %6 = tpu.matmul %5, %4, %cst_4 {dimension_numbers = #tpu.dot_dimension_numbers<[1], [0], [0], [1], [0, 0, 1, 1], [], []>} : vector<16x4xbf16>, vector<4x128xbf16>, vector<16x128xf32> -> vector<16x128xf32>
    %c0_5 = arith.constant 0 : index
    %c0_6 = arith.constant 0 : index
    %7 = vector.load %arg4[%c0_5, %c0_6] : memref<16x1xf32, #tpu.memory_space<vmem>>, vector<16x1xf32>
    %8 = vector.broadcast %7 : vector<16x1xf32> to vector<16x128xf32>
    %9 = arith.addf %6, %8 : vector<16x128xf32>
    %cst_7 = arith.constant 0.000000e+00 : f32
    %10 = vector.broadcast %cst_7 : f32 to vector<16x128xf32>
    %11 = arith.maximumf %9, %10 : vector<16x128xf32>
    %12 = arith.truncf %11 : vector<16x128xf32> to vector<16x128xbf16>
    %c0_8 = arith.constant 0 : index
    %c0_9 = arith.constant 0 : index
    %13 = vector.load %arg5[%c0_8, %c0_9] : memref<8x4xbf16, #tpu.memory_space<vmem>>, vector<8x4xbf16>
    %14 = vector.extract_strided_slice %12 {offsets = [0, 0], sizes = [4, 128], strides = [1, 1]} : vector<16x128xbf16> to vector<4x128xbf16>
    %cst_10 = arith.constant dense<0.000000e+00> : vector<8x128xf32>
    %15 = tpu.matmul %13, %14, %cst_10 {dimension_numbers = #tpu.dot_dimension_numbers<[1], [0], [0], [1], [0, 0, 1, 1], [], []>} : vector<8x4xbf16>, vector<4x128xbf16>, vector<8x128xf32> -> vector<8x128xf32>
    %16 = vector.extract_strided_slice %12 {offsets = [4, 0], sizes = [4, 128], strides = [1, 1]} : vector<16x128xbf16> to vector<4x128xbf16>
    %cst_11 = arith.constant dense<0.000000e+00> : vector<8x128xf32>
    %17 = tpu.matmul %13, %16, %cst_11 {dimension_numbers = #tpu.dot_dimension_numbers<[1], [0], [0], [1], [0, 0, 1, 1], [], []>} : vector<8x4xbf16>, vector<4x128xbf16>, vector<8x128xf32> -> vector<8x128xf32>
    %18 = vector.extract_strided_slice %12 {offsets = [8, 0], sizes = [4, 128], strides = [1, 1]} : vector<16x128xbf16> to vector<4x128xbf16>
    %cst_12 = arith.constant dense<0.000000e+00> : vector<8x128xf32>
    %19 = tpu.matmul %13, %18, %cst_12 {dimension_numbers = #tpu.dot_dimension_numbers<[1], [0], [0], [1], [0, 0, 1, 1], [], []>} : vector<8x4xbf16>, vector<4x128xbf16>, vector<8x128xf32> -> vector<8x128xf32>
    %20 = vector.extract_strided_slice %12 {offsets = [12, 0], sizes = [4, 128], strides = [1, 1]} : vector<16x128xbf16> to vector<4x128xbf16>
    %cst_13 = arith.constant dense<0.000000e+00> : vector<8x128xf32>
    %21 = tpu.matmul %13, %20, %cst_13 {dimension_numbers = #tpu.dot_dimension_numbers<[1], [0], [0], [1], [0, 0, 1, 1], [], []>} : vector<8x4xbf16>, vector<4x128xbf16>, vector<8x128xf32> -> vector<8x128xf32>
    %22 = tpu.concatenate %15, %17, %19, %21 in 0 : vector<8x128xf32>, vector<8x128xf32>, vector<8x128xf32>, vector<8x128xf32> -> vector<32x128xf32>
    %c0_14 = arith.constant 0 : index
    %c0_15 = arith.constant 0 : index
    %23 = vector.load %arg6[%c0_14, %c0_15] : memref<32x1xf32, #tpu.memory_space<vmem>>, vector<32x1xf32>
    %24 = vector.broadcast %23 : vector<32x1xf32> to vector<32x128xf32>
    %25 = arith.addf %22, %24 : vector<32x128xf32>
    %c0_16 = arith.constant 0 : index
    %c0_17 = arith.constant 0 : index
    %c0_18 = arith.constant 0 : index
    %26 = vector.load %arg7[%c0_16, %c0_17, %c0_18] : memref<1x32x128xf32, #tpu.memory_space<vmem>>, vector<1x32x128xf32>
    %27 = vector.shape_cast %26 : vector<1x32x128xf32> to vector<32x128xf32>
    %28 = vector.shape_cast %25 : vector<32x128xf32> to vector<1x32x128xf32>
    tpu.vector_store %arg7[%c0_16, %c0_17, %c0_18], %28 {strides = array<i32>} : memref<1x32x128xf32, #tpu.memory_space<vmem>>, vector<1x32x128xf32>,
    return
  }
  func.func @transform_0(%arg0: i32, %arg1: i32) -> (i32, i32, i32) {
    %c0_i32 = arith.constant 0 : i32
    %c0_i32_0 = arith.constant 0 : i32
    return %arg0, %c0_i32, %arg1 : i32, i32, i32
  }
  func.func @transform_1(%arg0: i32, %arg1: i32) -> (i32, i32) {
    %c0_i32 = arith.constant 0 : i32
    %c0_i32_0 = arith.constant 0 : i32
    %c0_i32_1 = arith.constant 0 : i32
    return %c0_i32, %c0_i32_0 : i32, i32
  }
  func.func @transform_2(%arg0: i32, %arg1: i32) -> (i32, i32) {
    %c0_i32 = arith.constant 0 : i32
    %c0_i32_0 = arith.constant 0 : i32
    %c0_i32_1 = arith.constant 0 : i32
    return %c0_i32, %c0_i32_0 : i32, i32
  }
  func.func @transform_3(%arg0: i32, %arg1: i32) -> (i32, i32) {
    %c0_i32 = arith.constant 0 : i32
    %c0_i32_0 = arith.constant 0 : i32
    %c0_i32_1 = arith.constant 0 : i32
    return %c0_i32, %c0_i32_0 : i32, i32
  }
  func.func @transform_4(%arg0: i32, %arg1: i32) -> (i32, i32) {
    %c0_i32 = arith.constant 0 : i32
    %c0_i32_0 = arith.constant 0 : i32
    %c0_i32_1 = arith.constant 0 : i32
    return %c0_i32, %c0_i32_0 : i32, i32
  }
  func.func @transform_5(%arg0: i32, %arg1: i32) -> (i32, i32, i32) {
    %c0_i32 = arith.constant 0 : i32
    %c0_i32_0 = arith.constant 0 : i32
    return %arg0, %c0_i32, %arg1 : i32, i32, i32
  }
}

</mosaic_0001>

<llo_original>
// kernel: tile.18
$region0: #{tile.18}
  #allocation0 [shape = 's32[1]{0}', space=sflag, size = 0x4, scoped, tag = 'scoped memory for tile.18']
  %s0 = inlined_call_operand.vmem [shape: f32[8], index: 0, kind: input, shape index: {}]
  %s1 = inlined_call_operand.vmem [shape: f32[4,8], index: 1, kind: output, shape index: {}]
  // Predicated region
  $region2: #{tile.18} parent=0 // pred_check
    _
  $region3: #{tile.18} parent=0 // pred_check_branch
    %3 = sbr.rel (0) target = $region5
  $region4: #{tile.18} parent=0 // pred_region
    _
  $region5: #{tile.18} parent=0 // pred_fallthru
    _
  %v4 = vld [vmem:[%s0] ss:$0 sm:$0xff]
  %5 = vst [vmem:[%s1] sm:$0xf] %v4

// kernel: tile.13
$region0: #{tile.13}
  #allocation2 [shape = 's32[1]{0}', space=sflag, size = 0x4, scoped, tag = 'scoped memory for tile.13']
  %s0 = inlined_call_operand.hbm [shape: f32[4], index: 0, kind: input, shape index: {}]
  %s1 = inlined_call_operand.vmem [shape: f32[4,4], index: 1, kind: output, shape index: {}]
  $region1: #{tile.13} parent=0
    #allocation0 [shape = 'u8[512]{0}', space=vmem, size = 0x400, scoped, tag = 'operand span for operand 0']
    #allocation1 [shape = 's32[1]{0}', space=sflag, size = 0x4, scoped, tag = 'scoped memory for tile.13']
    %2 = vsyncpa [#allocation1], 0
    // Predicated region
    $region2: #{tile.13} parent=1 // pred_check
      _
    $region3: #{tile.13} parent=1 // pred_check_branch
      %4 = sbr.rel (0) target = $region5
    $region4: #{tile.13} parent=1 // pred_region
      %s6 = ssub.s32 16, 16
      %7 = vsyncadd [#allocation1], %s6
      %s9 = sshll.u32 [#allocation0], 4
      %s10 = int_to_ptr.vmem [resolvable:$true] %s9
      %12 = dma.hbm_to_vmem [thread:$0]  %s0, 16, %s10, [#allocation1]
    $region5: #{tile.13} parent=1 // pred_fallthru
      _
    // Predicated region
    $region6: #{tile.13} parent=1 // pred_check
      _
    $region7: #{tile.13} parent=1 // pred_check_branch
      %14 = sbr.rel (0) target = $region9
    $region8: #{tile.13} parent=1 // pred_region
      %15 = dma.done [#allocation1], 16
    $region9: #{tile.13} parent=1 // pred_fallthru
      _
    %v16 = vld [vmem:[#allocation0] ss:$0 sm:$0xff]
    %17 = vst [vmem:[%s1] sm:$0xf] %v16
    %18 = vsyncpa [#allocation1], 1

// kernel: tile.0
$region0: #{tile.0}
  %s0 = inlined_call_operand.vmem [shape: f32[4,4], index: 0, kind: input, shape index: {}]
  %s1 = inlined_call_operand.vmem [shape: f32[16,1], index: 1, kind: output, shape index: {}]
  $region1: #{tile.0} parent=0
    #allocation0 [shape = 'u8[4096]{0}', space=vmem, size = 0x1000, scoped, tag = 'scoped mem for input reshape']
    %s3 = sshll.u32 1, 4
    %s4 = ssub.s32 %s3, 1
    %v5 = vld [vmem:[%s0] sm:%s4]
    %6 = vst [vmem:[#allocation0] sm:%s4] %v5
    %v7 = vld [vmem:[#allocation0] sm:$0xf]
    %vm8 = vcmask 7168
    %9 = vst.msk [vmem:[%s1] ss:$4 sm:$0xf] %vm8, %v7
    %v10 = vld [vmem:[#allocation0] sm:$0xf]
    %11 = vrot.lane.b32.xlu0 %v10, 127
    %v12 = vpop.permute.xlu0 %11
    %vm13 = vcmask 7168
    %s14 = scalar_lea.vmem %s1, 1
    %15 = vst.msk [vmem:[%s14] ss:$4 sm:$0xf] %vm13, %v12
    %v16 = vld [vmem:[#allocation0] sm:$0xf]
    %17 = vrot.lane.b32.xlu0 %v16, 126
    %v18 = vpop.permute.xlu0 %17
    %vm19 = vcmask 7168
    %s20 = scalar_lea.vmem %s1, 2
    %21 = vst.msk [vmem:[%s20] ss:$4 sm:$0xf] %vm19, %v18
    %v22 = vld [vmem:[#allocation0] sm:$0xf]
    %23 = vrot.lane.b32.xlu0 %v22, 125
    %v24 = vpop.permute.xlu0 %23
    %vm25 = vcmask 7168
    %s26 = scalar_lea.vmem %s1, 3
    %27 = vst.msk [vmem:[%s26] ss:$4 sm:$0xf] %vm25, %v24

// kernel: tile.1
$region0: #{tile.1}
  %s0 = inlined_call_operand.vmem [shape: f32[4,8], index: 0, kind: input, shape index: {}]
  %s1 = inlined_call_operand.vmem [shape: f32[32,1], index: 1, kind: output, shape index: {}]
  $region1: #{tile.1} parent=0
    #allocation0 [shape = 'u8[4096]{0}', space=vmem, size = 0x1000, scoped, tag = 'scoped mem for input reshape']
    %s3 = sshll.u32 1, 4
    %s4 = ssub.s32 %s3, 1
    %v5 = vld [vmem:[%s0] sm:%s4]
    %6 = vst [vmem:[#allocation0] sm:%s4] %v5
    %v7 = vld [vmem:[#allocation0] sm:$0xf]
    %vm8 = vcmask 7168
    %9 = vst.msk [vmem:[%s1] ss:$8 sm:$0xf] %vm8, %v7
    %v10 = vld [vmem:[#allocation0] sm:$0xf]
    %11 = vrot.lane.b32.xlu0 %v10, 127
    %v12 = vpop.permute.xlu0 %11
    %vm13 = vcmask 7168
    %s14 = scalar_lea.vmem %s1, 1
    %15 = vst.msk [vmem:[%s14] ss:$8 sm:$0xf] %vm13, %v12
    %v16 = vld [vmem:[#allocation0] sm:$0xf]
    %17 = vrot.lane.b32.xlu0 %v16, 126
    %v18 = vpop.permute.xlu0 %17
    %vm19 = vcmask 7168
    %s20 = scalar_lea.vmem %s1, 2
    %21 = vst.msk [vmem:[%s20] ss:$8 sm:$0xf] %vm19, %v18
    %v22 = vld [vmem:[#allocation0] sm:$0xf]
    %23 = vrot.lane.b32.xlu0 %v22, 125
    %v24 = vpop.permute.xlu0 %23
    %vm25 = vcmask 7168
    %s26 = scalar_lea.vmem %s1, 3
    %27 = vst.msk [vmem:[%s26] ss:$8 sm:$0xf] %vm25, %v24
    %v28 = vld [vmem:[#allocation0] sm:$0xf]
    %29 = vrot.lane.b32.xlu0 %v28, 124
    %v30 = vpop.permute.xlu0 %29
    %vm31 = vcmask 7168
    %s32 = scalar_lea.vmem %s1, 4
    %33 = vst.msk [vmem:[%s32] ss:$8 sm:$0xf] %vm31, %v30
    %v34 = vld [vmem:[#allocation0] sm:$0xf]
    %35 = vrot.lane.b32.xlu0 %v34, 123
    %v36 = vpop.permute.xlu0 %35
    %vm37 = vcmask 7168
    %s38 = scalar_lea.vmem %s1, 5
    %39 = vst.msk [vmem:[%s38] ss:$8 sm:$0xf] %vm37, %v36
    %v40 = vld [vmem:[#allocation0] sm:$0xf]
    %41 = vrot.lane.b32.xlu0 %v40, 122
    %v42 = vpop.permute.xlu0 %41
    %vm43 = vcmask 7168
    %s44 = scalar_lea.vmem %s1, 6
    %45 = vst.msk [vmem:[%s44] ss:$8 sm:$0xf] %vm43, %v42
    %v46 = vld [vmem:[#allocation0] sm:$0xf]
    %47 = vrot.lane.b32.xlu0 %v46, 121
    %v48 = vpop.permute.xlu0 %47
    %vm49 = vcmask 7168
    %s50 = scalar_lea.vmem %s1, 7
    %51 = vst.msk [vmem:[%s50] ss:$8 sm:$0xf] %vm49, %v48

// kernel: upsample_block_pallas.1
$region0: #{upsample_block_pallas.1}
  #allocation0 [shape = 'u32[]', space=smem, size = 0x4, offset = 0x4, fixed_abs, tag = 'smem constant byte address 0x4 - core index']
  #allocation1 [shape = 'u32[144,128]{1,0:T(1,128)}', space=vmem, size = 0x12000, scoped, tag = 'internal scratch']
  %s0 = inlined_call_operand.vmem [shape: f32[2,4,256], index: 0, kind: input, shape index: {}]
  %s1 = inlined_call_operand.vmem [shape: bf16[16,4], index: 1, kind: input, shape index: {}]
  %s2 = inlined_call_operand.vmem [shape: f32[16,1], index: 2, kind: input, shape index: {}]
  %s3 = inlined_call_operand.vmem [shape: bf16[8,4], index: 3, kind: input, shape index: {}]
  %s4 = inlined_call_operand.vmem [shape: f32[32,1], index: 4, kind: input, shape index: {}]
  %s5 = inlined_call_operand.vmem [shape: f32[2,32,256], index: 5, kind: output, shape index: {}]
  %s6 = sld [smem:[#allocation0]]
  $region87: #{upsample_block_pallas.1} parent=0
    _
  %s8 = ssub.s32 1, %s6
  %s9 = scalar_select 0, %s8, %s6
  $region1: #{upsample_block_pallas.1} parent=0
    #allocation2 [shape = 'u8[32768]{0}', space=vmem, size = 0x8000, scoped, tag = 'output window, operand 0']
    loop: start=0, step=1, limit=6
    $region2: #{upsample_block_pallas.1} parent=1 // loop_pre_header
      _
    $region3: #{upsample_block_pallas.1} parent=1 // loop_header
      %s11 = sphi 0, %s15
      %p12 = scmp.ge.s32.totalorder %s11, 6
      %s18 = sphi 0, %s30
      %s19 = sphi 0, %s26
      %s20 = sphi 0, %s18
      %s21 = sphi 0, %s19
      %s22 = sphi 0, %s20
      %s23 = sphi 0, %s21
      %s35 = sphi 0, %s37
      %s38 = sphi 0, %s35
      %s39 = sphi 0, %s38
      %s55 = sphi 0, %s39
      %s59 = sphi 0, %s59
      %s61 = sphi 0, %s59
      %s62 = sphi 0, %s61
      %s76 = sphi 0, %s62
      %s80 = sphi 0, %s80
      %s82 = sphi 0, %s80
      %s83 = sphi 0, %s82
      %s97 = sphi 0, %s83
      %s101 = sphi 0, %s101
      %s103 = sphi 0, %s101
      %s104 = sphi 0, %s103
      %s118 = sphi 0, %s104
      %s122 = sphi 0, %s122
      %s124 = sphi 0, %s122
      %s125 = sphi 0, %s124
      %s139 = sphi 0, %s125
      %s147 = sphi 0, %s149
      %s150 = sphi 0, %s147
      %s151 = sphi 0, %s150
      %s167 = sphi 0, %s151
    $region4: #{upsample_block_pallas.1} parent=1 // loop_header_branch
      %14 = sbr.rel (%p12) target = $region8
    $region5: #{upsample_block_pallas.1} parent=1 // loop_body
      %s16 = ssub.s32 %s11, 1
      %s17 = ssub.s32 %s11, 2
      %s24 = sadd.s32 1, %s19
      %p25 = scmp.ge.s32.totalorder %s24, 2
      %s26 = scalar_select %p25, 0, %s24
      %s27 = sadd.s32 1, %s18
      %s28 = scalar_select %p25, %s27, %s18
      %p29 = scmp.ge.s32.totalorder %s28, 2
      %s30 = scalar_select %p29, 0, %s28
      %s31 = ssub.s32 %s18, %s30
      %s32 = ssub.s32 %s19, %s26
      %s33 = sor.u32 %s31, %s32
      %p34 = scmp.eq.s32.totalorder %s33, 0
      %s36 = sadd.s32 %s35, 1
      %s37 = scalar_select %p34, %s35, %s36
      %p40 = pneg %p34
      %p41 = scmp.eq.s32.totalorder %s11, 3
      %p42 = por %p40, %p41
      %p43 = scmp.ne.s32.totalorder %s35, %s38
      %p44 = scmp.eq.s32.totalorder %s11, 0
      %p45 = por %p43, %p44
      %p46 = scmp.ne.s32.totalorder %s35, %s38
      %p47 = scmp.eq.s32.totalorder %s16, 3
      %p48 = por %p46, %p47
      %p49 = scmp.ne.s32.totalorder %s38, %s39
      %p50 = scmp.eq.s32.totalorder %s16, 0
      %p51 = por %p49, %p50
      %p52 = scmp.ne.s32.totalorder %s38, %s39
      %p53 = scmp.eq.s32.totalorder %s17, 3
      %p54 = por %p52, %p53
      %p56 = scmp.ne.s32.totalorder %s39, %s55
      %p57 = scmp.eq.s32.totalorder %s17, 0
      %p58 = por %p56, %p57
      %s60 = sadd.s32 %s59, 1
      %p63 = scmp.eq.s32.totalorder %s11, 3
      %p64 = scmp.ne.s32.totalorder %s59, %s61
      %p65 = scmp.eq.s32.totalorder %s11, 0
      %p66 = por %p64, %p65
      %p67 = scmp.ne.s32.totalorder %s59, %s61
      %p68 = scmp.eq.s32.totalorder %s16, 3
      %p69 = por %p67, %p68
      %p70 = scmp.ne.s32.totalorder %s61, %s62
      %p71 = scmp.eq.s32.totalorder %s16, 0
      %p72 = por %p70, %p71
      %p73 = scmp.ne.s32.totalorder %s61, %s62
      %p74 = scmp.eq.s32.totalorder %s17, 3
      %p75 = por %p73, %p74
      %p77 = scmp.ne.s32.totalorder %s62, %s76
      %p78 = scmp.eq.s32.totalorder %s17, 0
      %p79 = por %p77, %p78
      %s81 = sadd.s32 %s80, 1
      %p84 = scmp.eq.s32.totalorder %s11, 3
      %p85 = scmp.ne.s32.totalorder %s80, %s82
      %p86 = scmp.eq.s32.totalorder %s11, 0
      %p87 = por %p85, %p86
      %p88 = scmp.ne.s32.totalorder %s80, %s82
      %p89 = scmp.eq.s32.totalorder %s16, 3
      %p90 = por %p88, %p89
      %p91 = scmp.ne.s32.totalorder %s82, %s83
      %p92 = scmp.eq.s32.totalorder %s16, 0
      %p93 = por %p91, %p92
      %p94 = scmp.ne.s32.totalorder %s82, %s83
      %p95 = scmp.eq.s32.totalorder %s17, 3
      %p96 = por %p94, %p95
      %p98 = scmp.ne.s32.totalorder %s83, %s97
      %p99 = scmp.eq.s32.totalorder %s17, 0
      %p100 = por %p98, %p99
      %s102 = sadd.s32 %s101, 1
      %p105 = scmp.eq.s32.totalorder %s11, 3
      %p106 = scmp.ne.s32.totalorder %s101, %s103
      %p107 = scmp.eq.s32.totalorder %s11, 0
      %p108 = por %p106, %p107
      %p109 = scmp.ne.s32.totalorder %s101, %s103
      %p110 = scmp.eq.s32.totalorder %s16, 3
      %p111 = por %p109, %p110
      %p112 = scmp.ne.s32.totalorder %s103, %s104
      %p113 = scmp.eq.s32.totalorder %s16, 0
      %p114 = por %p112, %p113
      %p115 = scmp.ne.s32.totalorder %s103, %s104
      %p116 = scmp.eq.s32.totalorder %s17, 3
      %p117 = por %p115, %p116
      %p119 = scmp.ne.s32.totalorder %s104, %s118
      %p120 = scmp.eq.s32.totalorder %s17, 0
      %p121 = por %p119, %p120
      %s123 = sadd.s32 %s122, 1
      %p126 = scmp.eq.s32.totalorder %s11, 3
      %p127 = scmp.ne.s32.totalorder %s122, %s124
      %p128 = scmp.eq.s32.totalorder %s11, 0
      %p129 = por %p127, %p128
      %p130 = scmp.ne.s32.totalorder %s122, %s124
      %p131 = scmp.eq.s32.totalorder %s16, 3
      %p132 = por %p130, %p131
      %p133 = scmp.ne.s32.totalorder %s124, %s125
      %p134 = scmp.eq.s32.totalorder %s16, 0
      %p135 = por %p133, %p134
      %p136 = scmp.ne.s32.totalorder %s124, %s125
      %p137 = scmp.eq.s32.totalorder %s17, 3
      %p138 = por %p136, %p137
      %p140 = scmp.ne.s32.totalorder %s125, %s139
      %p141 = scmp.eq.s32.totalorder %s17, 0
      %p142 = por %p140, %p141
      %s143 = ssub.s32 %s18, %s30
      %s144 = ssub.s32 %s19, %s26
      %s145 = sor.u32 %s143, %s144
      %p146 = scmp.eq.s32.totalorder %s145, 0
      %s148 = sadd.s32 %s147, 1
      %s149 = scalar_select %p146, %s147, %s148
      %p152 = pneg %p146
      %p153 = scmp.eq.s32.totalorder %s11, 3
      %p154 = por %p152, %p153
      %p155 = scmp.ne.s32.totalorder %s147, %s150
      %p156 = scmp.eq.s32.totalorder %s11, 0
      %p157 = por %p155, %p156
      %p158 = scmp.ne.s32.totalorder %s147, %s150
      %p159 = scmp.eq.s32.totalorder %s16, 3
      %p160 = por %p158, %p159
      %p161 = scmp.ne.s32.totalorder %s150, %s151
      %p162 = scmp.eq.s32.totalorder %s16, 0
      %p163 = por %p161, %p162
      %p164 = scmp.ne.s32.totalorder %s150, %s151
      %p165 = scmp.eq.s32.totalorder %s17, 3
      %p166 = por %p164, %p165
      %p168 = scmp.ne.s32.totalorder %s151, %s167
      %p169 = scmp.eq.s32.totalorder %s17, 0
      %p170 = por %p168, %p169
      %p171 = scmp.le.s32.totalorder 1, %s11
      %p172 = scmp.lt.s32.totalorder %s11, 5
      %p173 = pnand %p171, %p172
      %p174 = pneg %p173
      // Predicated region
      $region9: #{upsample_block_pallas.1} parent=5 // pred_check
        _
      $region10: #{upsample_block_pallas.1} parent=5 // pred_check_branch
        %176 = sbr.rel (%p173) target = $region12
      $region11: #{upsample_block_pallas.1} parent=5 // pred_region
        %s177 = ssub.s32 %s11, 1
        // Predicated region
        $region13: #{upsample_block_pallas.1} parent=11 // pred_check
          %p178 = pneg %p72
        $region14: #{upsample_block_pallas.1} parent=11 // pred_check_branch
          %180 = sbr.rel (%p178) target = $region16
        $region15: #{upsample_block_pallas.1} parent=11 // pred_region
          _
        $region16: #{upsample_block_pallas.1} parent=11 // pred_fallthru
          _
        // Predicated region
        $region17: #{upsample_block_pallas.1} parent=11 // pred_check
          %p181 = pneg %p93
        $region18: #{upsample_block_pallas.1} parent=11 // pred_check_branch
          %183 = sbr.rel (%p181) target = $region20
        $region19: #{upsample_block_pallas.1} parent=11 // pred_region
          _
        $region20: #{upsample_block_pallas.1} parent=11 // pred_fallthru
          _
        // Predicated region
        $region21: #{upsample_block_pallas.1} parent=11 // pred_check
          %p184 = pneg %p114
        $region22: #{upsample_block_pallas.1} parent=11 // pred_check_branch
          %186 = sbr.rel (%p184) target = $region24
        $region23: #{upsample_block_pallas.1} parent=11 // pred_region
          _
        $region24: #{upsample_block_pallas.1} parent=11 // pred_fallthru
          _
        // Predicated region
        $region25: #{upsample_block_pallas.1} parent=11 // pred_check
          %p187 = pneg %p135
        $region26: #{upsample_block_pallas.1} parent=11 // pred_check_branch
          %189 = sbr.rel (%p187) target = $region28
        $region27: #{upsample_block_pallas.1} parent=11 // pred_region
          _
        $region28: #{upsample_block_pallas.1} parent=11 // pred_fallthru
          _
      $region12: #{upsample_block_pallas.1} parent=5 // pred_fallthru
        _
      %p190 = scmp.lt.s32.totalorder %s11, 4
      // Predicated region
      $region29: #{upsample_block_pallas.1} parent=5 // pred_check
        %p191 = pneg %p190
      $region30: #{upsample_block_pallas.1} parent=5 // pred_check_branch
        %193 = sbr.rel (%p191) target = $region32
      $region31: #{upsample_block_pallas.1} parent=5 // pred_region
        // Predicated region
        $region33: #{upsample_block_pallas.1} parent=31 // pred_check
          %p194 = pneg %p45
        $region34: #{upsample_block_pallas.1} parent=31 // pred_check_branch
          %196 = sbr.rel (%p194) target = $region36
        $region35: #{upsample_block_pallas.1} parent=31 // pred_region
          %p197 = scmp.lt.s32.totalorder %s18, 1
          %s198 = scalar_select %p197, %s18, 1
          %p199 = scmp.lt.s32.totalorder %s19, 1
          %s200 = scalar_select %p199, %s19, 1
          %s201 = smul.addr %s198, 2
          %s202 = sadd.s32 %s200, %s201
          %s203 = smul.addr %s202, 4
          %s204 = scalar_lea.vmem %s0, %s203
        $region36: #{upsample_block_pallas.1} parent=31 // pred_fallthru
          _
      $region32: #{upsample_block_pallas.1} parent=5 // pred_fallthru
        _
      %p205 = scmp.le.s32.totalorder 1, %s11
      %p206 = scmp.lt.s32.totalorder %s11, 5
      %p207 = pnand %p205, %p206
      %p208 = pneg %p207
      // Predicated region
      $region37: #{upsample_block_pallas.1} parent=5 // pred_check
        _
      $region38: #{upsample_block_pallas.1} parent=5 // pred_check_branch
        %210 = sbr.rel (%p207) target = $region40
      $region39: #{upsample_block_pallas.1} parent=5 // pred_region
        %s211 = ssub.s32 %s11, 1
        %p212 = scmp.lt.s32.totalorder %s20, 1
        %s213 = scalar_select %p212, %s20, 1
        %p214 = scmp.lt.s32.totalorder %s21, 1
        %s215 = scalar_select %p214, %s21, 1
        %s216 = smul.addr %s213, 2
        %s217 = sadd.s32 %s215, %s216
        %s218 = smul.addr %s217, 4
        %s219 = scalar_lea.vmem %s0, %s218
        %p220 = pneg %p51
        %p221 = pneg %p48
        %p222 = pneg %p72
        %p223 = pneg %p69
        %p224 = pneg %p93
        %p225 = pneg %p90
        %p226 = pneg %p114
        %p227 = pneg %p111
        %p228 = pneg %p135
        %p229 = pneg %p132
        %p230 = pneg %p163
        %p231 = pneg %p160
        %s232 = sand.u32 %s150, 1
        %s233 = sand.u32 %s150, 1
        %s234 = smul.addr %s233, 32
        %s235 = scalar_lea.vmem [#allocation2], %s234
        %p236 = scmp.lt.s32.totalorder %s20, 1
        %s237 = scalar_select %p236, %s20, 1
        %p238 = scmp.lt.s32.totalorder %s21, 1
        %s239 = scalar_select %p238, %s21, 1
        %s240 = smul.addr %s237, 2
        %s241 = sadd.s32 %s239, %s240
        %s242 = smul.addr %s241, 4
        %s243 = scalar_lea.vmem %s0, %s242
        %v245 = vld [vmem:[%s243] sm:$0xf]
        %v246 = vmax.f32 %v245, 0.0
        %v247 = vpack.c.bf16 %v246, %v246
        %v248 = vld [vmem:[%s1] sm:$0xf]
        %v249 = vld [vmem:[%s1 + $0x4] sm:$0xf]
        %v250 = vld [vmem:[%s2] sm:$0xff]
        %v251 = vld [vmem:[%s2 + $0x8] sm:$0xff]
        %253 = vset.pattern.permute.xlu0 0
        %254 = vperm.xlu0 %253, %v250
        %v255 = vpop.permute.xlu0 %254
        %258 = vset.pattern.permute.xlu0 0
        %259 = vperm.xlu0 %258, %v251
        %v260 = vpop.permute.xlu0 %259
        %v264 = vunpack.c.l.b16 %v248
        %v265 = vunpack.c.l.b16 %v249
        %v266 = vpack.c.b16 %v265, %v264
        %vm267 = vcmask 31744
        %v269 = vsel %vm267, %v266, 0
        %vm271 = vcmask 1041408
        %v273 = vsel %vm271, %v247, 0
        %275 = vmatprep.subr.bf16.mxu0 0
        %276 = vmatpush1.bf16.msra.mxu0 0
        %277 = vmatprep.subr.bf16.mxu0 0
        %278 = vmatpush1.bf16.msra.mxu0 0
        %279 = vmatprep.subr.bf16.mxu0 0
        %280 = vmatpush1.bf16.msra.mxu0 0
        %281 = vmatprep.subr.bf16.mxu0 0
        %282 = vmatpush1.bf16.msra.mxu0 0
        %283 = vmatprep.subr.bf16.mxu0 0
        %284 = vmatpush1.bf16.msra.mxu0 0
        %285 = vmatprep.subr.bf16.mxu0 0
        %286 = vmatpush1.bf16.msra.mxu0 0
        %287 = vmatprep.subr.bf16.mxu0 0
        %288 = vmatpush1.bf16.msra.mxu0 0
        %289 = vmatprep.subr.bf16.mxu0 0
        %290 = vmatpush1.bf16.msra.mxu0 %v273
        %291 = vmatprep.subr.bf16.mxu0 0
        %292 = vmatpush2.bf16.msra.mxu0 0
        %293 = vmatprep.subr.bf16.mxu0 0
        %294 = vmatpush2.bf16.msra.mxu0 0
        %295 = vmatprep.subr.bf16.mxu0 0
        %296 = vmatpush2.bf16.msra.mxu0 0
        %297 = vmatprep.subr.bf16.mxu0 0
        %298 = vmatpush2.bf16.msra.mxu0 0
        %299 = vmatprep.subr.bf16.mxu0 0
        %300 = vmatpush2.bf16.msra.mxu0 0
        %301 = vmatprep.subr.bf16.mxu0 0
        %302 = vmatpush2.bf16.msra.mxu0 0
        %303 = vmatprep.subr.bf16.mxu0 0
        %304 = vmatpush2.bf16.msra.mxu0 0
        %305 = vmatprep.subr.bf16.mxu0 0
        %306 = vmatpush2.bf16.msra.mxu0 0
        %307 = vmatprep.mubr.bf16.mxu0 0
        %308 = vmatmul.mubr.bf16.gmra.mxu0 %v269
        %v309 = vpop.f32.mrf.mxu0
        %v310 = vadd.f32 %v255, %v309
        %v311 = vpop.f32.mrf.mxu0
        %v312 = vpop.f32.mrf.mxu0
        %v313 = vadd.f32 %v260, %v312
        %v314 = vpop.f32.mrf.mxu0
        %315 = vdwg.mxu0
        %v316 = vmax.f32 %v310, 0.0
        %v317 = vmax.f32 %v313, 0.0
        %v318 = vpack.c.bf16 %v317, %v316
        %v319 = vld [vmem:[%s3] sm:$0xf]
        %v321 = vsel %vm267, %v319, 0
        %v324 = vsel %vm271, %v318, 0
        %326 = vmatprep.subr.bf16.mxu0 0
        %327 = vmatpush1.bf16.msra.mxu0 0
        %328 = vmatprep.subr.bf16.mxu0 0
        %329 = vmatpush1.bf16.msra.mxu0 0
        %330 = vmatprep.subr.bf16.mxu0 0
        %331 = vmatpush1.bf16.msra.mxu0 0
        %332 = vmatprep.subr.bf16.mxu0 0
        %333 = vmatpush1.bf16.msra.mxu0 0
        %334 = vmatprep.subr.bf16.mxu0 0
        %335 = vmatpush1.bf16.msra.mxu0 0
        %336 = vmatprep.subr.bf16.mxu0 0
        %337 = vmatpush1.bf16.msra.mxu0 0
        %338 = vmatprep.subr.bf16.mxu0 0
        %339 = vmatpush1.bf16.msra.mxu0 0
        %340 = vmatprep.subr.bf16.mxu0 0
        %341 = vmatpush1.bf16.msra.mxu0 %v324
        %342 = vmatprep.subr.bf16.mxu0 0
        %343 = vmatpush2.bf16.msra.mxu0 0
        %344 = vmatprep.subr.bf16.mxu0 0
        %345 = vmatpush2.bf16.msra.mxu0 0
        %346 = vmatprep.subr.bf16.mxu0 0
        %347 = vmatpush2.bf16.msra.mxu0 0
        %348 = vmatprep.subr.bf16.mxu0 0
        %349 = vmatpush2.bf16.msra.mxu0 0
        %350 = vmatprep.subr.bf16.mxu0 0
        %351 = vmatpush2.bf16.msra.mxu0 0
        %352 = vmatprep.subr.bf16.mxu0 0
        %353 = vmatpush2.bf16.msra.mxu0 0
        %354 = vmatprep.subr.bf16.mxu0 0
        %355 = vmatpush2.bf16.msra.mxu0 0
        %356 = vmatprep.subr.bf16.mxu0 0
        %357 = vmatpush2.bf16.msra.mxu0 0
        %358 = vmatprep.mubr.bf16.mxu0 0
        %359 = vmatmul.mubr.bf16.gmra.mxu0 %v321
        %v360 = vpop.f32.mrf.mxu0
        %v361 = vadd.f32 0.0, %v360
        %v362 = vpop.f32.mrf.mxu0
        %v363 = vpop.f32.mrf.mxu0
        %v364 = vpop.f32.mrf.mxu0
        %365 = vdwg.mxu0
        %v367 = vrot.slane %v318, 2
        %v369 = vsel %vm271, %v367, 0
        %371 = vmatprep.subr.bf16.mxu0 0
        %372 = vmatpush1.bf16.msra.mxu0 0
        %373 = vmatprep.subr.bf16.mxu0 0
        %374 = vmatpush1.bf16.msra.mxu0 0
        %375 = vmatprep.subr.bf16.mxu0 0
        %376 = vmatpush1.bf16.msra.mxu0 0
        %377 = vmatprep.subr.bf16.mxu0 0
        %378 = vmatpush1.bf16.msra.mxu0 0
        %379 = vmatprep.subr.bf16.mxu0 0
        %380 = vmatpush1.bf16.msra.mxu0 0
        %381 = vmatprep.subr.bf16.mxu0 0
        %382 = vmatpush1.bf16.msra.mxu0 0
        %383 = vmatprep.subr.bf16.mxu0 0
        %384 = vmatpush1.bf16.msra.mxu0 0
        %385 = vmatprep.subr.bf16.mxu0 0
        %386 = vmatpush1.bf16.msra.mxu0 %v369
        %387 = vmatprep.subr.bf16.mxu0 0
        %388 = vmatpush2.bf16.msra.mxu0 0
        %389 = vmatprep.subr.bf16.mxu0 0
        %390 = vmatpush2.bf16.msra.mxu0 0
        %391 = vmatprep.subr.bf16.mxu0 0
        %392 = vmatpush2.bf16.msra.mxu0 0
        %393 = vmatprep.subr.bf16.mxu0 0
        %394 = vmatpush2.bf16.msra.mxu0 0
        %395 = vmatprep.subr.bf16.mxu0 0
        %396 = vmatpush2.bf16.msra.mxu0 0
        %397 = vmatprep.subr.bf16.mxu0 0
        %398 = vmatpush2.bf16.msra.mxu0 0
        %399 = vmatprep.subr.bf16.mxu0 0
        %400 = vmatpush2.bf16.msra.mxu0 0
        %401 = vmatprep.subr.bf16.mxu0 0
        %402 = vmatpush2.bf16.msra.mxu0 0
        %403 = vmatprep.mubr.bf16.mxu0 0
        %404 = vmatmul.mubr.bf16.gmra.mxu0 %v321
        %v405 = vpop.f32.mrf.mxu0
        %v406 = vadd.f32 0.0, %v405
        %v407 = vpop.f32.mrf.mxu0
        %v408 = vpop.f32.mrf.mxu0
        %v409 = vpop.f32.mrf.mxu0
        %410 = vdwg.mxu0
        %v411 = vrot.slane %v318, 4
        %v413 = vsel %vm271, %v411, 0
        %415 = vmatprep.subr.bf16.mxu0 0
        %416 = vmatpush1.bf16.msra.mxu0 0
        %417 = vmatprep.subr.bf16.mxu0 0
        %418 = vmatpush1.bf16.msra.mxu0 0
        %419 = vmatprep.subr.bf16.mxu0 0
        %420 = vmatpush1.bf16.msra.mxu0 0
        %421 = vmatprep.subr.bf16.mxu0 0
        %422 = vmatpush1.bf16.msra.mxu0 0
        %423 = vmatprep.subr.bf16.mxu0 0
        %424 = vmatpush1.bf16.msra.mxu0 0
        %425 = vmatprep.subr.bf16.mxu0 0
        %426 = vmatpush1.bf16.msra.mxu0 0
        %427 = vmatprep.subr.bf16.mxu0 0
        %428 = vmatpush1.bf16.msra.mxu0 0
        %429 = vmatprep.subr.bf16.mxu0 0
        %430 = vmatpush1.bf16.msra.mxu0 %v413
        %431 = vmatprep.subr.bf16.mxu0 0
        %432 = vmatpush2.bf16.msra.mxu0 0
        %433 = vmatprep.subr.bf16.mxu0 0
        %434 = vmatpush2.bf16.msra.mxu0 0
        %435 = vmatprep.subr.bf16.mxu0 0
        %436 = vmatpush2.bf16.msra.mxu0 0
        %437 = vmatprep.subr.bf16.mxu0 0
        %438 = vmatpush2.bf16.msra.mxu0 0
        %439 = vmatprep.subr.bf16.mxu0 0
        %440 = vmatpush2.bf16.msra.mxu0 0
        %441 = vmatprep.subr.bf16.mxu0 0
        %442 = vmatpush2.bf16.msra.mxu0 0
        %443 = vmatprep.subr.bf16.mxu0 0
        %444 = vmatpush2.bf16.msra.mxu0 0
        %445 = vmatprep.subr.bf16.mxu0 0
        %446 = vmatpush2.bf16.msra.mxu0 0
        %447 = vmatprep.mubr.bf16.mxu0 0
        %448 = vmatmul.mubr.bf16.gmra.mxu0 %v321
        %v449 = vpop.f32.mrf.mxu0
        %v450 = vadd.f32 0.0, %v449
        %v451 = vpop.f32.mrf.mxu0
        %v452 = vpop.f32.mrf.mxu0
        %v453 = vpop.f32.mrf.mxu0
        %454 = vdwg.mxu0
        %v455 = vrot.slane %v318, 6
        %v457 = vsel %vm271, %v455, 0
        %459 = vmatprep.subr.bf16.mxu0 0
        %460 = vmatpush1.bf16.msra.mxu0 0
        %461 = vmatprep.subr.bf16.mxu0 0
        %462 = vmatpush1.bf16.msra.mxu0 0
        %463 = vmatprep.subr.bf16.mxu0 0
        %464 = vmatpush1.bf16.msra.mxu0 0
        %465 = vmatprep.subr.bf16.mxu0 0
        %466 = vmatpush1.bf16.msra.mxu0 0
        %467 = vmatprep.subr.bf16.mxu0 0
        %468 = vmatpush1.bf16.msra.mxu0 0
        %469 = vmatprep.subr.bf16.mxu0 0
        %470 = vmatpush1.bf16.msra.mxu0 0
        %471 = vmatprep.subr.bf16.mxu0 0
        %472 = vmatpush1.bf16.msra.mxu0 0
        %473 = vmatprep.subr.bf16.mxu0 0
        %474 = vmatpush1.bf16.msra.mxu0 %v457
        %475 = vmatprep.subr.bf16.mxu0 0
        %476 = vmatpush2.bf16.msra.mxu0 0
        %477 = vmatprep.subr.bf16.mxu0 0
        %478 = vmatpush2.bf16.msra.mxu0 0
        %479 = vmatprep.subr.bf16.mxu0 0
        %480 = vmatpush2.bf16.msra.mxu0 0
        %481 = vmatprep.subr.bf16.mxu0 0
        %482 = vmatpush2.bf16.msra.mxu0 0
        %483 = vmatprep.subr.bf16.mxu0 0
        %484 = vmatpush2.bf16.msra.mxu0 0
        %485 = vmatprep.subr.bf16.mxu0 0
        %486 = vmatpush2.bf16.msra.mxu0 0
        %487 = vmatprep.subr.bf16.mxu0 0
        %488 = vmatpush2.bf16.msra.mxu0 0
        %489 = vmatprep.subr.bf16.mxu0 0
        %490 = vmatpush2.bf16.msra.mxu0 0
        %491 = vmatprep.mubr.bf16.mxu0 0
        %492 = vmatmul.mubr.bf16.gmra.mxu0 %v321
        %v493 = vpop.f32.mrf.mxu0
        %v494 = vadd.f32 0.0, %v493
        %v495 = vpop.f32.mrf.mxu0
        %v496 = vpop.f32.mrf.mxu0
        %v497 = vpop.f32.mrf.mxu0
        %498 = vdwg.mxu0
        %v499 = vld [vmem:[%s4] sm:$0xff]
        %v500 = vld [vmem:[%s4 + $0x8] sm:$0xff]
        %v501 = vld [vmem:[%s4 + $0x10] sm:$0xff]
        %v502 = vld [vmem:[%s4 + $0x18] sm:$0xff]
        %504 = vset.pattern.permute.xlu0 0
        %505 = vperm.xlu0 %504, %v499
        %v506 = vpop.permute.xlu0 %505
        %509 = vset.pattern.permute.xlu0 0
        %510 = vperm.xlu0 %509, %v500
        %v511 = vpop.permute.xlu0 %510
        %514 = vset.pattern.permute.xlu0 0
        %515 = vperm.xlu0 %514, %v501
        %v516 = vpop.permute.xlu0 %515
        %519 = vset.pattern.permute.xlu0 0
        %520 = vperm.xlu0 %519, %v502
        %v521 = vpop.permute.xlu0 %520
        %v523 = vadd.f32 %v361, %v506
        %v524 = vadd.f32 %v406, %v511
        %v525 = vadd.f32 %v450, %v516
        %v526 = vadd.f32 %v494, %v521
        %527 = vst [vmem:[%s235] sm:$0xff] %v523
        %528 = vst [vmem:[%s235 + $0x8] sm:$0xff] %v524
        %529 = vst [vmem:[%s235 + $0x10] sm:$0xff] %v525
        %530 = vst [vmem:[%s235 + $0x18] sm:$0xff] %v526
        %s531 = sand.u32 %s150, 1
        %s532 = sand.u32 %s150, 1
        %s533 = smul.addr %s532, 32
        %s534 = scalar_lea.vmem [#allocation2], %s533
        // Predicated region
        $region41: #{upsample_block_pallas.1} parent=39 // pred_check
          %p535 = pneg %p160
        $region42: #{upsample_block_pallas.1} parent=39 // pred_check_branch
          %537 = sbr.rel (%p535) target = $region44
        $region43: #{upsample_block_pallas.1} parent=39 // pred_region
          %s538 = smul.addr %s20, 8
          %s539 = sadd.s32 %s21, %s538
          %s540 = smul.addr %s539, 8
          %s541 = scalar_lea.vmem %s5, %s540
          // Predicated region
          $region45: #{upsample_block_pallas.1} parent=43 // pred_check
            _
          $region46: #{upsample_block_pallas.1} parent=43 // pred_check_branch
            %543 = sbr.rel (0) target = $region48
          $region47: #{upsample_block_pallas.1} parent=43 // pred_region
            // Predicated region
            $region49: #{upsample_block_pallas.1} parent=47 // pred_check
              _
            $region50: #{upsample_block_pallas.1} parent=47 // pred_check_branch
              %545 = sbr.rel (0) target = $region52
            $region51: #{upsample_block_pallas.1} parent=47 // pred_region
              // Predicated region
              $region64: #{upsample_block_pallas.1} parent=51 // pred_check
                _
              $region65: #{upsample_block_pallas.1} parent=51 // pred_check_branch
                %567 = sbr.rel (0) target = $region67
              $region66: #{upsample_block_pallas.1} parent=51 // pred_region
                loop: start=0, step=1, limit=1
                $region68: #{upsample_block_pallas.1} parent=66 // loop_pre_header
                  _
                $region69: #{upsample_block_pallas.1} parent=66 // loop_header
                  %s569 = sphi 0, %s573
                  %p570 = scmp.ge.s32.totalorder %s569, 1
                  %s574 = sphi %s534, %s534
                  %s575 = sphi %s541, %s541
                $region70: #{upsample_block_pallas.1} parent=66 // loop_header_branch
                  %572 = sbr.rel (%p570) target = $region74
                $region71: #{upsample_block_pallas.1} parent=66 // loop_body
                  %v576 = vld [vmem:[%s574] sm:$0xff]
                  %577 = vst [vmem:[%s575] sm:$0xff] %v576
                  %v578 = vld [vmem:[%s574 + $0x8] sm:$0xff]
                  %579 = vst [vmem:[%s575 + $0x10] sm:$0xff] %v578
                  %v580 = vld [vmem:[%s574 + $0x10] sm:$0xff]
                  %581 = vst [vmem:[%s575 + $0x20] sm:$0xff] %v580
                  %v582 = vld [vmem:[%s574 + $0x18] sm:$0xff]
                  %583 = vst [vmem:[%s575 + $0x30] sm:$0xff] %v582
                $region72: #{upsample_block_pallas.1} parent=66 // loop_footer
                  %s573 = sadd.s32 1, %s569
                $region73: #{upsample_block_pallas.1} parent=66 // loop_footer_branch
                  %568 = sbr.rel target = $region69
                $region74: #{upsample_block_pallas.1} parent=66 // loop_exit
                  _
              $region67: #{upsample_block_pallas.1} parent=51 // pred_fallthru
                _
              // Predicated region
              $region75: #{upsample_block_pallas.1} parent=51 // pred_check
                _
              $region76: #{upsample_block_pallas.1} parent=51 // pred_check_branch
                %585 = sbr.rel target = $region78
              $region77: #{upsample_block_pallas.1} parent=51 // pred_region
                _
              $region78: #{upsample_block_pallas.1} parent=51 // pred_fallthru
                _
            $region52: #{upsample_block_pallas.1} parent=47 // pred_fallthru
              _
            // Predicated region
            $region53: #{upsample_block_pallas.1} parent=47 // pred_check
              _
            $region54: #{upsample_block_pallas.1} parent=47 // pred_check_branch
              %547 = sbr.rel target = $region56
            $region55: #{upsample_block_pallas.1} parent=47 // pred_region
              %s549 = ssub.s32 256, 1
              loop: start=0, step=1, limit=1
              $region57: #{upsample_block_pallas.1} parent=55 // loop_pre_header
                _
              $region58: #{upsample_block_pallas.1} parent=55 // loop_header
                %s551 = sphi 0, %s555
                %p552 = scmp.ge.s32.totalorder %s551, 1
                %s556 = sphi %s534, %s534
                %s557 = sphi %s541, %s541
              $region59: #{upsample_block_pallas.1} parent=55 // loop_header_branch
                %554 = sbr.rel (%p552) target = $region63
              $region60: #{upsample_block_pallas.1} parent=55 // loop_body
                %v558 = vld [vmem:[%s556] sm:%s549]
                %559 = vst [vmem:[%s557] sm:%s549] %v558
                %v560 = vld [vmem:[%s556 + $0x8] sm:%s549]
                %561 = vst [vmem:[%s557 + $0x10] sm:%s549] %v560
                %v562 = vld [vmem:[%s556 + $0x10] sm:%s549]
                %563 = vst [vmem:[%s557 + $0x20] sm:%s549] %v562
                %v564 = vld [vmem:[%s556 + $0x18] sm:%s549]
                %565 = vst [vmem:[%s557 + $0x30] sm:%s549] %v564
              $region61: #{upsample_block_pallas.1} parent=55 // loop_footer
                %s555 = sadd.s32 1, %s551
              $region62: #{upsample_block_pallas.1} parent=55 // loop_footer_branch
                %550 = sbr.rel target = $region58
              $region63: #{upsample_block_pallas.1} parent=55 // loop_exit
                _
            $region56: #{upsample_block_pallas.1} parent=47 // pred_fallthru
              _
          $region48: #{upsample_block_pallas.1} parent=43 // pred_fallthru
            _
          %586 = vnop
        $region44: #{upsample_block_pallas.1} parent=39 // pred_fallthru
          _
      $region40: #{upsample_block_pallas.1} parent=5 // pred_fallthru
        _
      %p587 = scmp.le.s32.totalorder 2, %s11
      // Predicated region
      $region79: #{upsample_block_pallas.1} parent=5 // pred_check
        %p588 = pneg %p587
      $region80: #{upsample_block_pallas.1} parent=5 // pred_check_branch
        %590 = sbr.rel (%p588) target = $region82
      $region81: #{upsample_block_pallas.1} parent=5 // pred_region
        %s591 = ssub.s32 %s11, 2
        // Predicated region
        $region83: #{upsample_block_pallas.1} parent=81 // pred_check
          %p592 = pneg %p166
        $region84: #{upsample_block_pallas.1} parent=81 // pred_check_branch
          %594 = sbr.rel (%p592) target = $region86
        $region85: #{upsample_block_pallas.1} parent=81 // pred_region
          %s595 = sand.u32 %s151, 1
          %s596 = sand.u32 %s151, 1
          %s597 = smul.addr %s596, 32
          %s598 = scalar_lea.vmem [#allocation2], %s597
        $region86: #{upsample_block_pallas.1} parent=81 // pred_fallthru
          _
      $region82: #{upsample_block_pallas.1} parent=5 // pred_fallthru
        _
    $region6: #{upsample_block_pallas.1} parent=1 // loop_footer
      %s15 = sadd.s32 1, %s11
    $region7: #{upsample_block_pallas.1} parent=1 // loop_footer_branch
      %10 = sbr.rel target = $region3
    $region8: #{upsample_block_pallas.1} parent=1 // loop_exit
      _

</llo_original>
